<compile_context>
chip_gen: v7x
topology: tpu7x:2x2x1
jax: 0.10.0
libtpu: 0.0.40
codegen_flags: <defaults>
</compile_context>

<pallas_src>
import functools

import jax
import jax.numpy as jnp
from jax import lax
from jax.experimental import pallas as pl
from jax.experimental.pallas import tpu as pltpu


# ----------------------------------------------------------------------------
# Small config (scaled-down version of the PyTorch Config for a runnable demo)
# ----------------------------------------------------------------------------
class SmallConfig:
    sample_rate = 8000
    window_length = 192
    hop_length = 125
    n_fft = 256
    n_mels = 128          # multiple of 128 -> lane-dense fb / pooled output
    f_min = 0.0
    f_max = None          # -> sample_rate / 2
    n_classes = 10
    in_channels = 1
    device_ids = ["a", "b", "c", "s1", "s2", "s3"]


def _round_up(x: int, m: int) -> int:
    return (x + m - 1) // m * m


def _pick_row_tile(n_rows: int) -> int:
    """Largest row tile (<=512) that still leaves >=2 grid steps, so
    dimension_semantics=('parallel',) can shard across v7x's two TensorCores.
    At full scale this lands at 256-512 rows (fills the 256-wide v6e/v7x MXU)."""
    for t in (512, 256, 128, 64):
        if n_rows >= 2 * t:
            return t
    return 64


# ----------------------------------------------------------------------------
# Host-side constants (torchaudio-equivalent, computed once per config)
# ----------------------------------------------------------------------------
def hann_window_padded(win_length: int, n_fft: int) -> jnp.ndarray:
    n = jnp.arange(win_length, dtype=jnp.float32)
    w = 0.5 - 0.5 * jnp.cos(2.0 * jnp.pi * n / win_length)  # periodic Hann
    left = (n_fft - win_length) // 2
    right = n_fft - win_length - left
    return jnp.pad(w, (left, right))


def windowed_dft_matrix(n_fft: int, window: jnp.ndarray, n_freqs: int):
    """[cos | sin] real-DFT matrix (bins 0..n_freqs-1) with the Hann window
    folded in.  n_freqs = n_fft // 2: the Nyquist bin is dropped, which is
    exact because its mel-filterbank weight is 0 for f_max <= sr/2."""
    n = jnp.arange(n_fft, dtype=jnp.float32)[:, None]
    k = jnp.arange(n_freqs, dtype=jnp.float32)[None, :]
    ang = 2.0 * jnp.pi * n * k / n_fft
    cos_w = window[:, None] * jnp.cos(ang)                   # (n_fft, n_freqs)
    sin_w = window[:, None] * jnp.sin(ang)
    return jnp.concatenate([cos_w, sin_w], axis=1)           # (n_fft, 2*n_freqs)


def melscale_fbanks(n_freqs, f_min, f_max, n_mels, sample_rate):
    """torchaudio.functional.melscale_fbanks (htk, norm=None)."""
    all_freqs = jnp.linspace(0.0, sample_rate / 2.0, n_freqs)

    def hz_to_mel(f):
        return 2595.0 * jnp.log10(1.0 + f / 700.0)

    def mel_to_hz(m):
        return 700.0 * (10.0 ** (m / 2595.0) - 1.0)

    m_pts = jnp.linspace(hz_to_mel(jnp.float32(f_min)),
                         hz_to_mel(jnp.float32(f_max)), n_mels + 2)
    f_pts = mel_to_hz(m_pts)
    f_diff = f_pts[1:] - f_pts[:-1]                          # (n_mels + 1,)
    slopes = f_pts[None, :] - all_freqs[:, None]             # (n_freqs, n_mels + 2)
    down = -slopes[:, :-2] / f_diff[:-1]
    up = slopes[:, 2:] / f_diff[1:]
    return jnp.maximum(0.0, jnp.minimum(down, up)).astype(jnp.float32)


def frame_waveform(wav, n_fft, hop):
    """Centered, reflect-padded framing (torch.stft center=True). No windowing
    here: the Hann window is folded into the DFT matrices."""
    pad = n_fft // 2
    padded = jnp.pad(wav, ((0, 0), (pad, pad)), mode="reflect")
    n_frames = 1 + wav.shape[1] // hop
    idx = jnp.arange(n_frames)[:, None] * hop + jnp.arange(n_fft)[None, :]
    return padded[:, idx]                                    # (B, T, n_fft)


# ----------------------------------------------------------------------------
# Fused Pallas kernel: DFT -> power -> mel -> log -> per-batch mean pooling
# ----------------------------------------------------------------------------
def fused_logmel_pool_kernel(frames_ref, dft_ref, fb_ref, pool_ref, out_ref,
                             *, n_freqs):
    # Single bf16 MXU pass over [cos | sin]; f32 accumulation.
    y = jnp.dot(frames_ref[...], dft_ref[...],
                preferred_element_type=jnp.float32)          # (TILE_R, 2*F) f32
    re = y[:, :n_freqs]
    im = y[:, n_freqs:]
    power = re * re + im * im                                # (TILE_R, F) f32, VPU
    # Mel filterbank: bf16 operands (1/3 the MXU passes of f32), f32 acc.
    mel = jnp.dot(power.astype(jnp.bfloat16), fb_ref[...],
                  preferred_element_type=jnp.float32)        # (TILE_R, n_mels) f32
    logmel = jnp.log(mel + 1e-5)                             # f32 (EUP); fp16 cast deferred
    # Per-batch partial mean pooling as a matmul: rows of this tile -> batch
    # slots (pool already carries the 1/T factor and zeros for padded rows).
    out_ref[...] = lax.dot_general(
        pool_ref[...], logmel,
        dimension_numbers=(((0,), (0,)), ((), ())),
        preferred_element_type=jnp.float32)                  # (B_pad, n_mels)


def fused_logmel_pool_call(frames_rows, dft_bf16, fb_bf16, pool_f32,
                           *, tile_r, n_freqs):
    r_pad, n_fft = frames_rows.shape
    n_mels = fb_bf16.shape[1]
    b_pad = pool_f32.shape[1]
    n_tiles = r_pad // tile_r
    kernel = functools.partial(fused_logmel_pool_kernel, n_freqs=n_freqs)
    # Constant-index operands (dft/fb) are fetched into VMEM once; with the
    # collapsed grid the pipeline re-uses the same block on every step.
    return pl.pallas_call(
        kernel,
        out_shape=jax.ShapeDtypeStruct((n_tiles, b_pad, n_mels), jnp.float32),
        grid=(n_tiles,),
        in_specs=[
            pl.BlockSpec((tile_r, n_fft), lambda r: (r, 0)),
            pl.BlockSpec((n_fft, 2 * n_freqs), lambda r: (0, 0)),
            pl.BlockSpec((n_freqs, n_mels), lambda r: (0, 0)),
            pl.BlockSpec((tile_r, b_pad), lambda r: (r, 0)),
        ],
        out_specs=pl.BlockSpec((None, b_pad, n_mels), lambda r: (r, 0, 0)),
        compiler_params=pltpu.CompilerParams(
            dimension_semantics=("parallel",)),
    )(frames_rows, dft_bf16, fb_bf16, pool_f32)


# ----------------------------------------------------------------------------
# End-to-end forward (mirrors Baseline.forward)
# ----------------------------------------------------------------------------
def make_baseline_forward(cfg=SmallConfig):
    n_freqs = cfg.n_fft // 2          # Nyquist bin dropped (mel weight == 0)
    n_dev = len(cfg.device_ids)

    window = hann_window_padded(cfg.window_length, cfg.n_fft)
    dft_bf16 = windowed_dft_matrix(cfg.n_fft, window,
                                   n_freqs).astype(jnp.bfloat16)
    f_max = cfg.f_max if cfg.f_max is not None else cfg.sample_rate / 2.0
    fb_full = melscale_fbanks(cfg.n_fft // 2 + 1, cfg.f_min, f_max,
                              cfg.n_mels, cfg.sample_rate)
    fb_bf16 = fb_full[:n_freqs].astype(jnp.bfloat16)         # (F, n_mels)

    @jax.jit
    def forward_jit(waveform, dev_idx, head_w, head_b):
        B = waveform.shape[0]
        wav = waveform[:, 0, :].astype(jnp.bfloat16)          # [B, n_samples]
        frames = frame_waveform(wav, cfg.n_fft, cfg.hop_length)  # [B, T, n_fft]
        T = frames.shape[1]
        n_rows = B * T
        tile_r = _pick_row_tile(n_rows)
        r_pad = _round_up(n_rows, tile_r)
        b_pad = max(8, _round_up(B, 8))

        # Flatten batch*time into one row-major slab so every MXU pass is full.
        frames_rows = frames.reshape(n_rows, cfg.n_fft)
        frames_rows = jnp.pad(frames_rows, ((0, r_pad - n_rows), (0, 0)))

        # Pooling matrix: pool[r, b] = 1/T if row r belongs to batch b, else 0
        # (padded rows contribute nothing).
        rows = jnp.arange(r_pad)
        row_batch = rows // T
        valid = rows < n_rows
        pool = ((row_batch[:, None] == jnp.arange(b_pad)[None, :])
                & valid[:, None]).astype(jnp.float32) / jnp.float32(T)

        partials = fused_logmel_pool_call(frames_rows, dft_bf16, fb_bf16, pool,
                                          tile_r=tile_r, n_freqs=n_freqs)
        pooled = partials.sum(axis=0)[:B]                     # (B, n_mels) f32

        # Stand-in per-device classifier head (half precision, tiny) in XLA.
        dev_idx = jnp.clip(dev_idx.astype(jnp.int32), 0, n_dev - 1)
        w_sel = head_w[dev_idx].astype(jnp.float32)           # (B, n_mels, n_classes)
        b_sel = head_b[dev_idx].astype(jnp.float32)           # (B, n_classes)
        pooled_h = pooled.astype(jnp.bfloat16).astype(jnp.float32)
        logits = jnp.einsum("bm,bmc->bc", pooled_h, w_sel) + b_sel
        return logits.astype(jnp.bfloat16)

    def baseline_forward(waveform, device_ids, params):
        dev_idx = jnp.asarray([cfg.device_ids.index(d) for d in device_ids],
                              dtype=jnp.int32)
        return forward_jit(waveform, dev_idx, params["head_w"], params["head_b"])

    return baseline_forward


# ----------------------------------------------------------------------------
# Main
# ----------------------------------------------------------------------------
if __name__ == "__main__":
    cfg = SmallConfig
    B = 2
    n_samples = 4000                      # 0.5 s at 8 kHz -> T = 33 frames
    n_devices = len(cfg.device_ids)

    key = jax.random.PRNGKey(0)
    k_wav, k_w, k_b = jax.random.split(key, 3)

    waveform = jax.random.normal(k_wav, (B, 1, n_samples), dtype=jnp.float32)
    params = {
        "head_w": (0.02 * jax.random.normal(
            k_w, (n_devices, cfg.n_mels, cfg.n_classes))).astype(jnp.bfloat16),
        "head_b": (0.01 * jax.random.normal(
            k_b, (n_devices, cfg.n_classes))).astype(jnp.bfloat16),
    }
    device_ids = ["a", "s1"]

    baseline_forward = make_baseline_forward(cfg)
    logits = baseline_forward(waveform, device_ids, params)
    logits = jax.block_until_ready(logits)

    assert logits.shape == (B, cfg.n_classes), logits.shape
    assert logits.dtype == jnp.bfloat16
    assert bool(jnp.all(jnp.isfinite(logits.astype(jnp.float32))))
    print("KERNEL_OK")
</pallas_src>

<mosaic_0001>
module attributes {stable_mosaic.version = 11 : i64} {
  func.func @fused_logmel_pool_kernel(%arg0: i32, %arg1: memref<64x256xbf16, #tpu.memory_space<vmem>>, %arg2: memref<256x256xbf16, #tpu.memory_space<vmem>>, %arg3: memref<128x128xbf16, #tpu.memory_space<vmem>>, %arg4: memref<64x8xf32, #tpu.memory_space<vmem>>, %arg5: memref<1x8x128xf32, #tpu.memory_space<vmem>>) attributes {dimension_semantics = [#tpu.dimension_semantics<parallel>], iteration_bounds = array<i64: 2>, scalar_prefetch = 0 : i64, scratch_operands = 0 : i64, tpu.core_type = #tpu.core_type<tc>, window_params = [{transform_indices = @transform_0, window_bounds = array<i64: 64, 256>}, {pipeline_mode = #tpu.pipeline_mode<synchronous>, transform_indices = @transform_1, window_bounds = array<i64: 256, 256>}, {pipeline_mode = #tpu.pipeline_mode<synchronous>, transform_indices = @transform_2, window_bounds = array<i64: 128, 128>}, {transform_indices = @transform_3, window_bounds = array<i64: 64, 8>}, {transform_indices = @transform_4, window_bounds = array<i64: 1, 8, 128>}]} {
    %c0 = arith.constant 0 : index
    %c0_0 = arith.constant 0 : index
    %0 = vector.load %arg1[%c0, %c0_0] : memref<64x256xbf16, #tpu.memory_space<vmem>>, vector<64x256xbf16>
    %c0_1 = arith.constant 0 : index
    %c0_2 = arith.constant 0 : index
    %1 = vector.load %arg2[%c0_1, %c0_2] : memref<256x256xbf16, #tpu.memory_space<vmem>>, vector<256x256xbf16>
    %cst = arith.constant dense<0.000000e+00> : vector<64x256xf32>
    %2 = tpu.matmul %0, %1, %cst {dimension_numbers = #tpu.dot_dimension_numbers<[1], [0], [0], [1], [0, 0, 1, 1], [], []>} : vector<64x256xbf16>, vector<256x256xbf16>, vector<64x256xf32> -> vector<64x256xf32>
    %3 = vector.extract_strided_slice %2 {offsets = [0, 0], sizes = [64, 128], strides = [1, 1]} : vector<64x256xf32> to vector<64x128xf32>
    %4 = vector.extract_strided_slice %2 {offsets = [0, 128], sizes = [64, 128], strides = [1, 1]} : vector<64x256xf32> to vector<64x128xf32>
    %5 = arith.mulf %3, %3 : vector<64x128xf32>
    %6 = arith.mulf %4, %4 : vector<64x128xf32>
    %7 = arith.addf %5, %6 : vector<64x128xf32>
    %8 = arith.truncf %7 : vector<64x128xf32> to vector<64x128xbf16>
    %c0_3 = arith.constant 0 : index
    %c0_4 = arith.constant 0 : index
    %9 = vector.load %arg3[%c0_3, %c0_4] : memref<128x128xbf16, #tpu.memory_space<vmem>>, vector<128x128xbf16>
    %cst_5 = arith.constant dense<0.000000e+00> : vector<64x128xf32>
    %10 = tpu.matmul %8, %9, %cst_5 {dimension_numbers = #tpu.dot_dimension_numbers<[1], [0], [0], [1], [0, 0, 1, 1], [], []>} : vector<64x128xbf16>, vector<128x128xbf16>, vector<64x128xf32> -> vector<64x128xf32>
    %cst_6 = arith.constant 9.99999974E-6 : f32
    %11 = vector.broadcast %cst_6 : f32 to vector<64x128xf32>
    %12 = arith.addf %10, %11 : vector<64x128xf32>
    %13 = math.log %12 : vector<64x128xf32>
    %c0_7 = arith.constant 0 : index
    %c0_8 = arith.constant 0 : index
    %14 = vector.load %arg4[%c0_7, %c0_8] : memref<64x8xf32, #tpu.memory_space<vmem>>, vector<64x8xf32>
    %cst_9 = arith.constant dense<0.000000e+00> : vector<8x128xf32>
    %15 = tpu.matmul %14, %13, %cst_9 {dimension_numbers = #tpu.dot_dimension_numbers<[0], [0], [1], [1], [0, 1, 1, 1], [], []>} : vector<64x8xf32>, vector<64x128xf32>, vector<8x128xf32> -> vector<8x128xf32>
    %c0_10 = arith.constant 0 : index
    %c0_11 = arith.constant 0 : index
    %c0_12 = arith.constant 0 : index
    %16 = vector.load %arg5[%c0_10, %c0_11, %c0_12] : memref<1x8x128xf32, #tpu.memory_space<vmem>>, vector<1x8x128xf32>
    %17 = vector.shape_cast %16 : vector<1x8x128xf32> to vector<8x128xf32>
    %18 = vector.shape_cast %15 : vector<8x128xf32> to vector<1x8x128xf32>
    tpu.vector_store %arg5[%c0_10, %c0_11, %c0_12], %18 {strides = array<i32>} : memref<1x8x128xf32, #tpu.memory_space<vmem>>, vector<1x8x128xf32>,
    return
  }
  func.func @transform_0(%arg0: i32) -> (i32, i32) {
    %c0_i32 = arith.constant 0 : i32
    %c0_i32_0 = arith.constant 0 : i32
    return %arg0, %c0_i32 : i32, i32
  }
  func.func @transform_1(%arg0: i32) -> (i32, i32) {
    %c0_i32 = arith.constant 0 : i32
    %c0_i32_0 = arith.constant 0 : i32
    %c0_i32_1 = arith.constant 0 : i32
    return %c0_i32, %c0_i32_0 : i32, i32
  }
  func.func @transform_2(%arg0: i32) -> (i32, i32) {
    %c0_i32 = arith.constant 0 : i32
    %c0_i32_0 = arith.constant 0 : i32
    %c0_i32_1 = arith.constant 0 : i32
    return %c0_i32, %c0_i32_0 : i32, i32
  }
  func.func @transform_3(%arg0: i32) -> (i32, i32) {
    %c0_i32 = arith.constant 0 : i32
    %c0_i32_0 = arith.constant 0 : i32
    return %arg0, %c0_i32 : i32, i32
  }
  func.func @transform_4(%arg0: i32) -> (i32, i32, i32) {
    %c0_i32 = arith.constant 0 : i32
    %c0_i32_0 = arith.constant 0 : i32
    %c0_i32_1 = arith.constant 0 : i32
    return %arg0, %c0_i32, %c0_i32_0 : i32, i32, i32
  }
}

</mosaic_0001>

<llo_original>
// kernel: forward_jit.1
$region0: #{forward_jit.1}
  #allocation0 [shape = 'u32[]', space=smem, size = 0x4, offset = 0x4, fixed_abs, tag = 'smem constant byte address 0x4 - core index']
  #allocation1 [shape = 'u32[144,128]{1,0:T(1,128)}', space=vmem, size = 0x12000, scoped, tag = 'internal scratch']
  %s0 = inlined_call_operand.vmem [shape: bf16[128,256], index: 0, kind: input, shape index: {}]
  %s1 = inlined_call_operand.vmem [shape: bf16[256,256], index: 1, kind: input, shape index: {}]
  %s2 = inlined_call_operand.vmem [shape: bf16[128,128], index: 2, kind: input, shape index: {}]
  %s3 = inlined_call_operand.vmem [shape: f32[128,8], index: 3, kind: input, shape index: {}]
  %s4 = inlined_call_operand.vmem [shape: f32[2,8,128], index: 4, kind: output, shape index: {}]
  %s5 = sld [smem:[#allocation0]]
  $region49: #{forward_jit.1} parent=0
    _
  %s7 = ssub.s32 1, %s5
  %s8 = scalar_select 0, %s7, %s5
  loop: start=0, step=1, limit=4
  $region2: #{forward_jit.1} parent=0 // loop_pre_header
    _
  $region3: #{forward_jit.1} parent=0 // loop_header
    %s10 = sphi 0, %s14
    %p11 = scmp.ge.s32.totalorder %s10, 4
    %s20 = sphi 0, %s22
    %s23 = sphi 0, %s20
    %s24 = sphi 0, %s23
    %s40 = sphi 0, %s24
    %s44 = sphi 0, %s44
    %s46 = sphi 0, %s44
    %s47 = sphi 0, %s46
    %s61 = sphi 0, %s47
    %s65 = sphi 0, %s65
    %s67 = sphi 0, %s65
    %s68 = sphi 0, %s67
    %s82 = sphi 0, %s68
    %s88 = sphi 0, %s90
    %s91 = sphi 0, %s88
    %s92 = sphi 0, %s91
    %s108 = sphi 0, %s92
    %s114 = sphi 0, %s116
    %s117 = sphi 0, %s114
    %s118 = sphi 0, %s117
    %s134 = sphi 0, %s118
  $region4: #{forward_jit.1} parent=0 // loop_header_branch
    %13 = sbr.rel (%p11) target = $region8
  $region5: #{forward_jit.1} parent=0 // loop_body
    %s15 = ssub.s32 %s10, 1
    %s16 = ssub.s32 %s10, 2
    %s17 = sadd.s32 %s10, 1
    %s18 = ssub.s32 %s10, %s17
    %p19 = scmp.eq.s32.totalorder %s18, 0
    %s21 = sadd.s32 %s20, 1
    %s22 = scalar_select %p19, %s20, %s21
    %p25 = pneg %p19
    %p26 = scmp.eq.s32.totalorder %s10, 1
    %p27 = por %p25, %p26
    %p28 = scmp.ne.s32.totalorder %s20, %s23
    %p29 = scmp.eq.s32.totalorder %s10, 0
    %p30 = por %p28, %p29
    %p31 = scmp.ne.s32.totalorder %s20, %s23
    %p32 = scmp.eq.s32.totalorder %s15, 1
    %p33 = por %p31, %p32
    %p34 = scmp.ne.s32.totalorder %s23, %s24
    %p35 = scmp.eq.s32.totalorder %s15, 0
    %p36 = por %p34, %p35
    %p37 = scmp.ne.s32.totalorder %s23, %s24
    %p38 = scmp.eq.s32.totalorder %s16, 1
    %p39 = por %p37, %p38
    %p41 = scmp.ne.s32.totalorder %s24, %s40
    %p42 = scmp.eq.s32.totalorder %s16, 0
    %p43 = por %p41, %p42
    %s45 = sadd.s32 %s44, 1
    %p48 = scmp.eq.s32.totalorder %s10, 1
    %p49 = scmp.ne.s32.totalorder %s44, %s46
    %p50 = scmp.eq.s32.totalorder %s10, 0
    %p51 = por %p49, %p50
    %p52 = scmp.ne.s32.totalorder %s44, %s46
    %p53 = scmp.eq.s32.totalorder %s15, 1
    %p54 = por %p52, %p53
    %p55 = scmp.ne.s32.totalorder %s46, %s47
    %p56 = scmp.eq.s32.totalorder %s15, 0
    %p57 = por %p55, %p56
    %p58 = scmp.ne.s32.totalorder %s46, %s47
    %p59 = scmp.eq.s32.totalorder %s16, 1
    %p60 = por %p58, %p59
    %p62 = scmp.ne.s32.totalorder %s47, %s61
    %p63 = scmp.eq.s32.totalorder %s16, 0
    %p64 = por %p62, %p63
    %s66 = sadd.s32 %s65, 1
    %p69 = scmp.eq.s32.totalorder %s10, 1
    %p70 = scmp.ne.s32.totalorder %s65, %s67
    %p71 = scmp.eq.s32.totalorder %s10, 0
    %p72 = por %p70, %p71
    %p73 = scmp.ne.s32.totalorder %s65, %s67
    %p74 = scmp.eq.s32.totalorder %s15, 1
    %p75 = por %p73, %p74
    %p76 = scmp.ne.s32.totalorder %s67, %s68
    %p77 = scmp.eq.s32.totalorder %s15, 0
    %p78 = por %p76, %p77
    %p79 = scmp.ne.s32.totalorder %s67, %s68
    %p80 = scmp.eq.s32.totalorder %s16, 1
    %p81 = por %p79, %p80
    %p83 = scmp.ne.s32.totalorder %s68, %s82
    %p84 = scmp.eq.s32.totalorder %s16, 0
    %p85 = por %p83, %p84
    %s86 = ssub.s32 %s10, %s17
    %p87 = scmp.eq.s32.totalorder %s86, 0
    %s89 = sadd.s32 %s88, 1
    %s90 = scalar_select %p87, %s88, %s89
    %p93 = pneg %p87
    %p94 = scmp.eq.s32.totalorder %s10, 1
    %p95 = por %p93, %p94
    %p96 = scmp.ne.s32.totalorder %s88, %s91
    %p97 = scmp.eq.s32.totalorder %s10, 0
    %p98 = por %p96, %p97
    %p99 = scmp.ne.s32.totalorder %s88, %s91
    %p100 = scmp.eq.s32.totalorder %s15, 1
    %p101 = por %p99, %p100
    %p102 = scmp.ne.s32.totalorder %s91, %s92
    %p103 = scmp.eq.s32.totalorder %s15, 0
    %p104 = por %p102, %p103
    %p105 = scmp.ne.s32.totalorder %s91, %s92
    %p106 = scmp.eq.s32.totalorder %s16, 1
    %p107 = por %p105, %p106
    %p109 = scmp.ne.s32.totalorder %s92, %s108
    %p110 = scmp.eq.s32.totalorder %s16, 0
    %p111 = por %p109, %p110
    %s112 = ssub.s32 %s10, %s17
    %p113 = scmp.eq.s32.totalorder %s112, 0
    %s115 = sadd.s32 %s114, 1
    %s116 = scalar_select %p113, %s114, %s115
    %p119 = pneg %p113
    %p120 = scmp.eq.s32.totalorder %s10, 1
    %p121 = por %p119, %p120
    %p122 = scmp.ne.s32.totalorder %s114, %s117
    %p123 = scmp.eq.s32.totalorder %s10, 0
    %p124 = por %p122, %p123
    %p125 = scmp.ne.s32.totalorder %s114, %s117
    %p126 = scmp.eq.s32.totalorder %s15, 1
    %p127 = por %p125, %p126
    %p128 = scmp.ne.s32.totalorder %s117, %s118
    %p129 = scmp.eq.s32.totalorder %s15, 0
    %p130 = por %p128, %p129
    %p131 = scmp.ne.s32.totalorder %s117, %s118
    %p132 = scmp.eq.s32.totalorder %s16, 1
    %p133 = por %p131, %p132
    %p135 = scmp.ne.s32.totalorder %s118, %s134
    %p136 = scmp.eq.s32.totalorder %s16, 0
    %p137 = por %p135, %p136
    %p138 = scmp.le.s32.totalorder 1, %s10
    %p139 = scmp.lt.s32.totalorder %s10, 3
    %p140 = pnand %p138, %p139
    %p141 = pneg %p140
    // Predicated region
    $region9: #{forward_jit.1} parent=5 // pred_check
      _
    $region10: #{forward_jit.1} parent=5 // pred_check_branch
      %143 = sbr.rel (%p140) target = $region12
    $region11: #{forward_jit.1} parent=5 // pred_region
      %s144 = ssub.s32 %s10, 1
      // Predicated region
      $region13: #{forward_jit.1} parent=11 // pred_check
        %p145 = pneg %p57
      $region14: #{forward_jit.1} parent=11 // pred_check_branch
        %147 = sbr.rel (%p145) target = $region16
      $region15: #{forward_jit.1} parent=11 // pred_region
        _
      $region16: #{forward_jit.1} parent=11 // pred_fallthru
        _
      // Predicated region
      $region17: #{forward_jit.1} parent=11 // pred_check
        %p148 = pneg %p78
      $region18: #{forward_jit.1} parent=11 // pred_check_branch
        %150 = sbr.rel (%p148) target = $region20
      $region19: #{forward_jit.1} parent=11 // pred_region
        _
      $region20: #{forward_jit.1} parent=11 // pred_fallthru
        _
    $region12: #{forward_jit.1} parent=5 // pred_fallthru
      _
    %p151 = scmp.lt.s32.totalorder %s10, 2
    // Predicated region
    $region21: #{forward_jit.1} parent=5 // pred_check
      %p152 = pneg %p151
    $region22: #{forward_jit.1} parent=5 // pred_check_branch
      %154 = sbr.rel (%p152) target = $region24
    $region23: #{forward_jit.1} parent=5 // pred_region
      // Predicated region
      $region25: #{forward_jit.1} parent=23 // pred_check
        %p155 = pneg %p30
      $region26: #{forward_jit.1} parent=23 // pred_check_branch
        %157 = sbr.rel (%p155) target = $region28
      $region27: #{forward_jit.1} parent=23 // pred_region
        %s158 = smul.u32 8, %s10
        %p159 = scmp.lt.s32.totalorder %s158, 15
        %s160 = scalar_select %p159, %s158, 15
        %s161 = smul.addr %s160, 2
        %s162 = smul.addr %s161, 4
        %s163 = scalar_lea.vmem %s0, %s162
        %s164 = smul.u32 8, %s10
      $region28: #{forward_jit.1} parent=23 // pred_fallthru
        _
      // Predicated region
      $region29: #{forward_jit.1} parent=23 // pred_check
        %p165 = pneg %p98
      $region30: #{forward_jit.1} parent=23 // pred_check_branch
        %167 = sbr.rel (%p165) target = $region32
      $region31: #{forward_jit.1} parent=23 // pred_region
        %s168 = smul.u32 8, %s10
        %p169 = scmp.lt.s32.totalorder %s168, 15
        %s170 = scalar_select %p169, %s168, 15
        %s171 = smul.addr %s170, 8
        %s172 = scalar_lea.vmem %s3, %s171
        %s173 = smul.u32 8, %s10
      $region32: #{forward_jit.1} parent=23 // pred_fallthru
        _
    $region24: #{forward_jit.1} parent=5 // pred_fallthru
      _
    %p174 = scmp.le.s32.totalorder 1, %s10
    %p175 = scmp.lt.s32.totalorder %s10, 3
    %p176 = pnand %p174, %p175
    %p177 = pneg %p176
    // Predicated region
    $region33: #{forward_jit.1} parent=5 // pred_check
      _
    $region34: #{forward_jit.1} parent=5 // pred_check_branch
      %179 = sbr.rel (%p176) target = $region36
    $region35: #{forward_jit.1} parent=5 // pred_region
      %s180 = ssub.s32 %s10, 1
      %s181 = smul.u32 8, %s15
      %p182 = scmp.lt.s32.totalorder %s181, 15
      %s183 = scalar_select %p182, %s181, 15
      %s184 = smul.addr %s183, 2
      %s185 = smul.addr %s184, 4
      %s186 = scalar_lea.vmem %s0, %s185
      %p187 = pneg %p36
      %p188 = pneg %p33
      %p189 = pneg %p57
      %p190 = pneg %p54
      %p191 = pneg %p78
      %p192 = pneg %p75
      %s193 = smul.u32 8, %s15
      %p194 = scmp.lt.s32.totalorder %s193, 15
      %s195 = scalar_select %p194, %s193, 15
      %s196 = smul.addr %s195, 8
      %s197 = scalar_lea.vmem %s3, %s196
      %p198 = pneg %p104
      %p199 = pneg %p101
      %p200 = pneg %p130
      %p201 = pneg %p127
      %p202 = scmp.lt.s32.totalorder %s15, 1
      %s203 = scalar_select %p202, %s15, 1
      %s204 = smul.addr %s203, 8
      %s205 = scalar_lea.vmem %s4, %s204
      %s206 = smul.u32 8, %s15
      %p207 = scmp.lt.s32.totalorder %s206, 15
      %s208 = scalar_select %p207, %s206, 15
      %s209 = smul.addr %s208, 2
      %s210 = smul.addr %s209, 4
      %s211 = scalar_lea.vmem %s0, %s210
      %s212 = smul.u32 8, %s15
      %s213 = smul.u32 8, %s15
      %p214 = scmp.lt.s32.totalorder %s213, 15
      %s215 = scalar_select %p214, %s213, 15
      %s216 = smul.addr %s215, 8
      %s217 = scalar_lea.vmem %s3, %s216
      %s218 = smul.u32 8, %s15
      %p219 = scmp.lt.s32.totalorder %s15, 1
      %s220 = scalar_select %p219, %s15, 1
      %s221 = smul.addr %s220, 8
      %s222 = scalar_lea.vmem %s4, %s221
      %v224 = vld [vmem:[%s211] sm:$0xff]
      %v225 = vld [vmem:[%s211 + $0x8] sm:$0xff]
      %v226 = vld [vmem:[%s211 + $0x10] sm:$0xff]
      %v227 = vld [vmem:[%s211 + $0x18] sm:$0xff]
      %v228 = vld [vmem:[%s211 + $0x20] sm:$0xff]
      %v229 = vld [vmem:[%s211 + $0x28] sm:$0xff]
      %v230 = vld [vmem:[%s211 + $0x30] sm:$0xff]
      %v231 = vld [vmem:[%s211 + $0x38] sm:$0xff]
      %v232 = vld [vmem:[%s1] sm:$0xff]
      %v233 = vld [vmem:[%s1 + $0x8] sm:$0xff]
      %v234 = vld [vmem:[%s1 + $0x10] sm:$0xff]
      %v235 = vld [vmem:[%s1 + $0x18] sm:$0xff]
      %v236 = vld [vmem:[%s1 + $0x20] sm:$0xff]
      %v237 = vld [vmem:[%s1 + $0x28] sm:$0xff]
      %v238 = vld [vmem:[%s1 + $0x30] sm:$0xff]
      %v239 = vld [vmem:[%s1 + $0x38] sm:$0xff]
      %v240 = vld [vmem:[%s1 + $0x40] sm:$0xff]
      %v241 = vld [vmem:[%s1 + $0x48] sm:$0xff]
      %v242 = vld [vmem:[%s1 + $0x50] sm:$0xff]
      %v243 = vld [vmem:[%s1 + $0x58] sm:$0xff]
      %v244 = vld [vmem:[%s1 + $0x60] sm:$0xff]
      %v245 = vld [vmem:[%s1 + $0x68] sm:$0xff]
      %v246 = vld [vmem:[%s1 + $0x70] sm:$0xff]
      %v247 = vld [vmem:[%s1 + $0x78] sm:$0xff]
      %v248 = vld [vmem:[%s1 + $0x80] sm:$0xff]
      %v249 = vld [vmem:[%s1 + $0x88] sm:$0xff]
      %v250 = vld [vmem:[%s1 + $0x90] sm:$0xff]
      %v251 = vld [vmem:[%s1 + $0x98] sm:$0xff]
      %v252 = vld [vmem:[%s1 + $0xa0] sm:$0xff]
      %v253 = vld [vmem:[%s1 + $0xa8] sm:$0xff]
      %v254 = vld [vmem:[%s1 + $0xb0] sm:$0xff]
      %v255 = vld [vmem:[%s1 + $0xb8] sm:$0xff]
      %v256 = vld [vmem:[%s1 + $0xc0] sm:$0xff]
      %v257 = vld [vmem:[%s1 + $0xc8] sm:$0xff]
      %v258 = vld [vmem:[%s1 + $0xd0] sm:$0xff]
      %v259 = vld [vmem:[%s1 + $0xd8] sm:$0xff]
      %v260 = vld [vmem:[%s1 + $0xe0] sm:$0xff]
      %v261 = vld [vmem:[%s1 + $0xe8] sm:$0xff]
      %v262 = vld [vmem:[%s1 + $0xf0] sm:$0xff]
      %v263 = vld [vmem:[%s1 + $0xf8] sm:$0xff]
      %v272 = vunpack.c.l.b16 %v224
      %v273 = vunpack.c.h.b16 %v224
      %v274 = vunpack.c.l.b16 %v225
      %v275 = vunpack.c.h.b16 %v225
      %v276 = vunpack.c.l.b16 %v226
      %v277 = vunpack.c.h.b16 %v226
      %v278 = vunpack.c.l.b16 %v227
      %v279 = vunpack.c.h.b16 %v227
      %v280 = vunpack.c.l.b16 %v228
      %v281 = vunpack.c.h.b16 %v228
      %v282 = vunpack.c.l.b16 %v229
      %v283 = vunpack.c.h.b16 %v229
      %v284 = vunpack.c.l.b16 %v230
      %v285 = vunpack.c.h.b16 %v230
      %v286 = vunpack.c.l.b16 %v231
      %v287 = vunpack.c.h.b16 %v231
      %v288 = vpack.c.b16 %v274, %v272
      %v289 = vpack.c.b16 %v275, %v273
      %v290 = vpack.c.b16 %v278, %v276
      %v291 = vpack.c.b16 %v279, %v277
      %v292 = vpack.c.b16 %v282, %v280
      %v293 = vpack.c.b16 %v283, %v281
      %v294 = vpack.c.b16 %v286, %v284
      %v295 = vpack.c.b16 %v287, %v285
      %v336 = vunpack.c.l.b16 %v232
      %v337 = vunpack.c.h.b16 %v232
      %v338 = vunpack.c.l.b16 %v233
      %v339 = vunpack.c.h.b16 %v233
      %v340 = vunpack.c.l.b16 %v234
      %v341 = vunpack.c.h.b16 %v234
      %v342 = vunpack.c.l.b16 %v235
      %v343 = vunpack.c.h.b16 %v235
      %v344 = vunpack.c.l.b16 %v236
      %v345 = vunpack.c.h.b16 %v236
      %v346 = vunpack.c.l.b16 %v237
      %v347 = vunpack.c.h.b16 %v237
      %v348 = vunpack.c.l.b16 %v238
      %v349 = vunpack.c.h.b16 %v238
      %v350 = vunpack.c.l.b16 %v239
      %v351 = vunpack.c.h.b16 %v239
      %v352 = vunpack.c.l.b16 %v240
      %v353 = vunpack.c.h.b16 %v240
      %v354 = vunpack.c.l.b16 %v241
      %v355 = vunpack.c.h.b16 %v241
      %v356 = vunpack.c.l.b16 %v242
      %v357 = vunpack.c.h.b16 %v242
      %v358 = vunpack.c.l.b16 %v243
      %v359 = vunpack.c.h.b16 %v243
      %v360 = vunpack.c.l.b16 %v244
      %v361 = vunpack.c.h.b16 %v244
      %v362 = vunpack.c.l.b16 %v245
      %v363 = vunpack.c.h.b16 %v245
      %v364 = vunpack.c.l.b16 %v246
      %v365 = vunpack.c.h.b16 %v246
      %v366 = vunpack.c.l.b16 %v247
      %v367 = vunpack.c.h.b16 %v247
      %v368 = vunpack.c.l.b16 %v248
      %v369 = vunpack.c.h.b16 %v248
      %v370 = vunpack.c.l.b16 %v249
      %v371 = vunpack.c.h.b16 %v249
      %v372 = vunpack.c.l.b16 %v250
      %v373 = vunpack.c.h.b16 %v250
      %v374 = vunpack.c.l.b16 %v251
      %v375 = vunpack.c.h.b16 %v251
      %v376 = vunpack.c.l.b16 %v252
      %v377 = vunpack.c.h.b16 %v252
      %v378 = vunpack.c.l.b16 %v253
      %v379 = vunpack.c.h.b16 %v253
      %v380 = vunpack.c.l.b16 %v254
      %v381 = vunpack.c.h.b16 %v254
      %v382 = vunpack.c.l.b16 %v255
      %v383 = vunpack.c.h.b16 %v255
      %v384 = vunpack.c.l.b16 %v256
      %v385 = vunpack.c.h.b16 %v256
      %v386 = vunpack.c.l.b16 %v257
      %v387 = vunpack.c.h.b16 %v257
      %v388 = vunpack.c.l.b16 %v258
      %v389 = vunpack.c.h.b16 %v258
      %v390 = vunpack.c.l.b16 %v259
      %v391 = vunpack.c.h.b16 %v259
      %v392 = vunpack.c.l.b16 %v260
      %v393 = vunpack.c.h.b16 %v260
      %v394 = vunpack.c.l.b16 %v261
      %v395 = vunpack.c.h.b16 %v261
      %v396 = vunpack.c.l.b16 %v262
      %v397 = vunpack.c.h.b16 %v262
      %v398 = vunpack.c.l.b16 %v263
      %v399 = vunpack.c.h.b16 %v263
      %v400 = vpack.c.b16 %v338, %v336
      %v401 = vpack.c.b16 %v339, %v337
      %v402 = vpack.c.b16 %v342, %v340
      %v403 = vpack.c.b16 %v343, %v341
      %v404 = vpack.c.b16 %v346, %v344
      %v405 = vpack.c.b16 %v347, %v345
      %v406 = vpack.c.b16 %v350, %v348
      %v407 = vpack.c.b16 %v351, %v349
      %v408 = vpack.c.b16 %v354, %v352
      %v409 = vpack.c.b16 %v355, %v353
      %v410 = vpack.c.b16 %v358, %v356
      %v411 = vpack.c.b16 %v359, %v357
      %v412 = vpack.c.b16 %v362, %v360
      %v413 = vpack.c.b16 %v363, %v361
      %v414 = vpack.c.b16 %v366, %v364
      %v415 = vpack.c.b16 %v367, %v365
      %v416 = vpack.c.b16 %v370, %v368
      %v417 = vpack.c.b16 %v371, %v369
      %v418 = vpack.c.b16 %v374, %v372
      %v419 = vpack.c.b16 %v375, %v373
      %v420 = vpack.c.b16 %v378, %v376
      %v421 = vpack.c.b16 %v379, %v377
      %v422 = vpack.c.b16 %v382, %v380
      %v423 = vpack.c.b16 %v383, %v381
      %v424 = vpack.c.b16 %v386, %v384
      %v425 = vpack.c.b16 %v387, %v385
      %v426 = vpack.c.b16 %v390, %v388
      %v427 = vpack.c.b16 %v391, %v389
      %v428 = vpack.c.b16 %v394, %v392
      %v429 = vpack.c.b16 %v395, %v393
      %v430 = vpack.c.b16 %v398, %v396
      %v431 = vpack.c.b16 %v399, %v397
      %464 = vmatprep.subr.bf16.mxu0 %v401
      %465 = vmatpush1.bf16.msra.mxu0 %v400
      %466 = vmatprep.subr.bf16.mxu0 %v403
      %467 = vmatpush1.bf16.msra.mxu0 %v402
      %468 = vmatprep.subr.bf16.mxu0 %v405
      %469 = vmatpush1.bf16.msra.mxu0 %v404
      %470 = vmatprep.subr.bf16.mxu0 %v407
      %471 = vmatpush1.bf16.msra.mxu0 %v406
      %472 = vmatprep.subr.bf16.mxu0 %v409
      %473 = vmatpush1.bf16.msra.mxu0 %v408
      %474 = vmatprep.subr.bf16.mxu0 %v411
      %475 = vmatpush1.bf16.msra.mxu0 %v410
      %476 = vmatprep.subr.bf16.mxu0 %v413
      %477 = vmatpush1.bf16.msra.mxu0 %v412
      %478 = vmatprep.subr.bf16.mxu0 %v415
      %479 = vmatpush1.bf16.msra.mxu0 %v414
      %480 = vmatprep.subr.bf16.mxu0 %v417
      %481 = vmatpush1.bf16.msra.mxu0 %v416
      %482 = vmatprep.subr.bf16.mxu0 %v419
      %483 = vmatpush1.bf16.msra.mxu0 %v418
      %484 = vmatprep.subr.bf16.mxu0 %v421
      %485 = vmatpush1.bf16.msra.mxu0 %v420
      %486 = vmatprep.subr.bf16.mxu0 %v423
      %487 = vmatpush1.bf16.msra.mxu0 %v422
      %488 = vmatprep.subr.bf16.mxu0 %v425
      %489 = vmatpush1.bf16.msra.mxu0 %v424
      %490 = vmatprep.subr.bf16.mxu0 %v427
      %491 = vmatpush1.bf16.msra.mxu0 %v426
      %492 = vmatprep.subr.bf16.mxu0 %v429
      %493 = vmatpush1.bf16.msra.mxu0 %v428
      %494 = vmatprep.subr.bf16.mxu0 %v431
      %495 = vmatpush1.bf16.msra.mxu0 %v430
      %496 = vmatprep.mubr.bf16.mxu0 %v289
      %497 = vmatmul.mubr.bf16.gmra.mrb[0].mxu0 %v288
      %v498 = vpop.f32.mrb[0].mxu0
      %v499 = vadd.f32 0.0, %v498
      %v500 = vpop.f32.mrb[0].mxu0
      %v501 = vadd.f32 0.0, %v500
      %v502 = vpop.f32.mrb[0].mxu0
      %v503 = vadd.f32 0.0, %v502
      %v504 = vpop.f32.mrb[0].mxu0
      %v505 = vadd.f32 0.0, %v504
      %506 = vmatprep.mubr.bf16.mxu0 %v291
      %507 = vmatmul.mubr.bf16.gmra.mrb[0].mxu0 %v290
      %v508 = vpop.f32.mrb[0].mxu0
      %v509 = vadd.f32 0.0, %v508
      %v510 = vpop.f32.mrb[0].mxu0
      %v511 = vadd.f32 0.0, %v510
      %v512 = vpop.f32.mrb[0].mxu0
      %v513 = vadd.f32 0.0, %v512
      %v514 = vpop.f32.mrb[0].mxu0
      %v515 = vadd.f32 0.0, %v514
      %516 = vmatprep.mubr.bf16.mxu0 %v293
      %517 = vmatmul.mubr.bf16.gmra.mrb[0].mxu0 %v292
      %v518 = vpop.f32.mrb[0].mxu0
      %v519 = vadd.f32 0.0, %v518
      %v520 = vpop.f32.mrb[0].mxu0
      %v521 = vadd.f32 0.0, %v520
      %v522 = vpop.f32.mrb[0].mxu0
      %v523 = vadd.f32 0.0, %v522
      %v524 = vpop.f32.mrb[0].mxu0
      %v525 = vadd.f32 0.0, %v524
      %526 = vmatprep.mubr.bf16.mxu0 %v295
      %527 = vmatmul.mubr.bf16.gmra.mrb[0].mxu0 %v294
      %v528 = vpop.f32.mrb[0].mxu0
      %v529 = vadd.f32 0.0, %v528
      %v530 = vpop.f32.mrb[0].mxu0
      %v531 = vadd.f32 0.0, %v530
      %v532 = vpop.f32.mrb[0].mxu0
      %v533 = vadd.f32 0.0, %v532
      %v534 = vpop.f32.mrb[0].mxu0
      %v535 = vadd.f32 0.0, %v534
      %536 = vdwg.mxu0
      %v537 = vmul.f32 %v499, %v499
      %v538 = vmul.f32 %v503, %v503
      %v539 = vmul.f32 %v509, %v509
      %v540 = vmul.f32 %v513, %v513
      %v541 = vmul.f32 %v519, %v519
      %v542 = vmul.f32 %v523, %v523
      %v543 = vmul.f32 %v529, %v529
      %v544 = vmul.f32 %v533, %v533
      %v545 = vmul.f32 %v501, %v501
      %v546 = vmul.f32 %v505, %v505
      %v547 = vmul.f32 %v511, %v511
      %v548 = vmul.f32 %v515, %v515
      %v549 = vmul.f32 %v521, %v521
      %v550 = vmul.f32 %v525, %v525
      %v551 = vmul.f32 %v531, %v531
      %v552 = vmul.f32 %v535, %v535
      %v553 = vadd.f32 %v537, %v545
      %v554 = vadd.f32 %v538, %v546
      %v555 = vadd.f32 %v539, %v547
      %v556 = vadd.f32 %v540, %v548
      %v557 = vadd.f32 %v541, %v549
      %v558 = vadd.f32 %v542, %v550
      %v559 = vadd.f32 %v543, %v551
      %v560 = vadd.f32 %v544, %v552
      %v561 = vpack.c.bf16 %v554, %v553
      %v562 = vpack.c.bf16 %v556, %v555
      %v563 = vpack.c.bf16 %v558, %v557
      %v564 = vpack.c.bf16 %v560, %v559
      %v565 = vld [vmem:[%s2] sm:$0xf]
      %v566 = vld [vmem:[%s2 + $0x4] sm:$0xf]
      %v567 = vld [vmem:[%s2 + $0x8] sm:$0xf]
      %v568 = vld [vmem:[%s2 + $0xc] sm:$0xf]
      %v569 = vld [vmem:[%s2 + $0x10] sm:$0xf]
      %v570 = vld [vmem:[%s2 + $0x14] sm:$0xf]
      %v571 = vld [vmem:[%s2 + $0x18] sm:$0xf]
      %v572 = vld [vmem:[%s2 + $0x1c] sm:$0xf]
      %v573 = vld [vmem:[%s2 + $0x20] sm:$0xf]
      %v574 = vld [vmem:[%s2 + $0x24] sm:$0xf]
      %v575 = vld [vmem:[%s2 + $0x28] sm:$0xf]
      %v576 = vld [vmem:[%s2 + $0x2c] sm:$0xf]
      %v577 = vld [vmem:[%s2 + $0x30] sm:$0xf]
      %v578 = vld [vmem:[%s2 + $0x34] sm:$0xf]
      %v579 = vld [vmem:[%s2 + $0x38] sm:$0xf]
      %v580 = vld [vmem:[%s2 + $0x3c] sm:$0xf]
      %v597 = vunpack.c.l.b16 %v565
      %v598 = vunpack.c.l.b16 %v566
      %v599 = vunpack.c.l.b16 %v567
      %v600 = vunpack.c.l.b16 %v568
      %v601 = vunpack.c.l.b16 %v569
      %v602 = vunpack.c.l.b16 %v570
      %v603 = vunpack.c.l.b16 %v571
      %v604 = vunpack.c.l.b16 %v572
      %v605 = vunpack.c.l.b16 %v573
      %v606 = vunpack.c.l.b16 %v574
      %v607 = vunpack.c.l.b16 %v575
      %v608 = vunpack.c.l.b16 %v576
      %v609 = vunpack.c.l.b16 %v577
      %v610 = vunpack.c.l.b16 %v578
      %v611 = vunpack.c.l.b16 %v579
      %v612 = vunpack.c.l.b16 %v580
      %v613 = vpack.c.b16 %v598, %v597
      %v614 = vpack.c.b16 %v600, %v599
      %v615 = vpack.c.b16 %v602, %v601
      %v616 = vpack.c.b16 %v604, %v603
      %v617 = vpack.c.b16 %v606, %v605
      %v618 = vpack.c.b16 %v608, %v607
      %v619 = vpack.c.b16 %v610, %v609
      %v620 = vpack.c.b16 %v612, %v611
      %629 = vmatprep.subr.bf16.mxu0 0
      %630 = vmatpush1.bf16.msra.mxu0 %v613
      %631 = vmatprep.subr.bf16.mxu0 0
      %632 = vmatpush1.bf16.msra.mxu0 %v614
      %633 = vmatprep.subr.bf16.mxu0 0
      %634 = vmatpush1.bf16.msra.mxu0 %v615
      %635 = vmatprep.subr.bf16.mxu0 0
      %636 = vmatpush1.bf16.msra.mxu0 %v616
      %637 = vmatprep.subr.bf16.mxu0 0
      %638 = vmatpush1.bf16.msra.mxu0 %v617
      %639 = vmatprep.subr.bf16.mxu0 0
      %640 = vmatpush1.bf16.msra.mxu0 %v618
      %641 = vmatprep.subr.bf16.mxu0 0
      %642 = vmatpush1.bf16.msra.mxu0 %v619
      %643 = vmatprep.subr.bf16.mxu0 0
      %644 = vmatpush1.bf16.msra.mxu0 %v620
      %645 = vmatprep.subr.bf16.mxu0 0
      %646 = vmatpush1.bf16.msra.mxu0 0
      %647 = vmatprep.subr.bf16.mxu0 0
      %648 = vmatpush1.bf16.msra.mxu0 0
      %649 = vmatprep.subr.bf16.mxu0 0
      %650 = vmatpush1.bf16.msra.mxu0 0
      %651 = vmatprep.subr.bf16.mxu0 0
      %652 = vmatpush1.bf16.msra.mxu0 0
      %653 = vmatprep.subr.bf16.mxu0 0
      %654 = vmatpush1.bf16.msra.mxu0 0
      %655 = vmatprep.subr.bf16.mxu0 0
      %656 = vmatpush1.bf16.msra.mxu0 0
      %657 = vmatprep.subr.bf16.mxu0 0
      %658 = vmatpush1.bf16.msra.mxu0 0
      %659 = vmatprep.subr.bf16.mxu0 0
      %660 = vmatpush1.bf16.msra.mxu0 0
      %661 = vmatprep.mubr.bf16.mxu0 0
      %662 = vmatmul.mubr.bf16.gmra.mrb[0].mxu0 %v561
      %v663 = vpop.f32.mrb[0].mxu0
      %v664 = vadd.f32 1e-05, %v663
      %v665 = vpop.f32.mrb[0].mxu0
      %v666 = vpop.f32.mrb[0].mxu0
      %v667 = vadd.f32 1e-05, %v666
      %v668 = vpop.f32.mrb[0].mxu0
      %669 = vmatprep.mubr.bf16.mxu0 0
      %670 = vmatmul.mubr.bf16.gmra.mrb[0].mxu0 %v562
      %v671 = vpop.f32.mrb[0].mxu0
      %v672 = vadd.f32 1e-05, %v671
      %v673 = vpop.f32.mrb[0].mxu0
      %v674 = vpop.f32.mrb[0].mxu0
      %v675 = vadd.f32 1e-05, %v674
      %v676 = vpop.f32.mrb[0].mxu0
      %677 = vmatprep.mubr.bf16.mxu0 0
      %678 = vmatmul.mubr.bf16.gmra.mrb[0].mxu0 %v563
      %v679 = vpop.f32.mrb[0].mxu0
      %v680 = vadd.f32 1e-05, %v679
      %v681 = vpop.f32.mrb[0].mxu0
      %v682 = vpop.f32.mrb[0].mxu0
      %v683 = vadd.f32 1e-05, %v682
      %v684 = vpop.f32.mrb[0].mxu0
      %685 = vmatprep.mubr.bf16.mxu0 0
      %686 = vmatmul.mubr.bf16.gmra.mrb[0].mxu0 %v564
      %v687 = vpop.f32.mrb[0].mxu0
      %v688 = vadd.f32 1e-05, %v687
      %v689 = vpop.f32.mrb[0].mxu0
      %v690 = vpop.f32.mrb[0].mxu0
      %v691 = vadd.f32 1e-05, %v690
      %v692 = vpop.f32.mrb[0].mxu0
      %693 = vdwg.mxu0
      %v694 = vlog2.pop %v664
      %v695 = vmul.f32 %v694, 0.6931472
      %v696 = vlog2.pop %v667
      %v697 = vmul.f32 %v696, 0.6931472
      %v698 = vlog2.pop %v672
      %v699 = vmul.f32 %v698, 0.6931472
      %v700 = vlog2.pop %v675
      %v701 = vmul.f32 %v700, 0.6931472
      %v702 = vlog2.pop %v680
      %v703 = vmul.f32 %v702, 0.6931472
      %v704 = vlog2.pop %v683
      %v705 = vmul.f32 %v704, 0.6931472
      %v706 = vlog2.pop %v688
      %v707 = vmul.f32 %v706, 0.6931472
      %v708 = vlog2.pop %v691
      %v709 = vmul.f32 %v708, 0.6931472
      %v710 = vld [vmem:[%s217] sm:$0xff]
      %v711 = vld [vmem:[%s217 + $0x8] sm:$0xff]
      %v712 = vld [vmem:[%s217 + $0x10] sm:$0xff]
      %v713 = vld [vmem:[%s217 + $0x18] sm:$0xff]
      %v714 = vld [vmem:[%s217 + $0x20] sm:$0xff]
      %v715 = vld [vmem:[%s217 + $0x28] sm:$0xff]
      %v716 = vld [vmem:[%s217 + $0x30] sm:$0xff]
      %v717 = vld [vmem:[%s217 + $0x38] sm:$0xff]
      %718 = vxpose.xlu0.b32.start [1/16] %v710, 128
      %719 = vxpose.xlu0.b32.cont [2/16] %v711, 128
      %720 = vxpose.xlu0.b32.cont [3/16] %v712, 128
      %721 = vxpose.xlu0.b32.cont [4/16] %v713, 128
      %722 = vxpose.xlu0.b32.cont [5/16] %v714, 128
      %723 = vxpose.xlu0.b32.cont [6/16] %v715, 128
      %724 = vxpose.xlu0.b32.cont [7/16] %v716, 128
      %725 = vxpose.xlu0.b32.cont [8/16] %v717, 128
      %726 = vxpose.xlu0.b32.cont [9/16] 0.0, 128
      %727 = vxpose.xlu0.b32.cont [10/16] 0.0, 128
      %728 = vxpose.xlu0.b32.cont [11/16] 0.0, 128
      %729 = vxpose.xlu0.b32.cont [12/16] 0.0, 128
      %730 = vxpose.xlu0.b32.cont [13/16] 0.0, 128
      %731 = vxpose.xlu0.b32.cont [14/16] 0.0, 128
      %732 = vxpose.xlu0.b32.cont [15/16] 0.0, 128
      %733 = vxpose.xlu0.b32.end [16/16] 0.0, 128
      %v734 = vpop.trf.xlu0
      %v735 = vpop.trf.xlu0
      %v736 = vpop.trf.xlu0
      %v737 = vpop.trf.xlu0
      %v738 = vpop.trf.xlu0
      %v739 = vpop.trf.xlu0
      %v740 = vpop.trf.xlu0
      %v741 = vpop.trf.xlu0
      %v742 = vpop.trf.xlu0
      %v743 = vpop.trf.xlu0
      %v744 = vpop.trf.xlu0
      %v745 = vpop.trf.xlu0
      %v746 = vpop.trf.xlu0
      %v747 = vpop.trf.xlu0
      %v748 = vpop.trf.xlu0
      %v749 = vpop.trf.xlu0
      %vm750 = vcmask 523264
      %v752 = vsel %vm750, %v734, 0
      %754 = vmatprep.subr.mxu0 0.0
      %755 = vmatpush1.msra.mxu0 %v695
      %756 = vmatprep.subr.mxu0 0.0
      %757 = vmatpush1.msra.mxu0 %v697
      %758 = vmatprep.subr.mxu0 0.0
      %759 = vmatpush1.msra.mxu0 %v699
      %760 = vmatprep.subr.mxu0 0.0
      %761 = vmatpush1.msra.mxu0 %v701
      %762 = vmatprep.subr.mxu0 0.0
      %763 = vmatpush1.msra.mxu0 %v703
      %764 = vmatprep.subr.mxu0 0.0
      %765 = vmatpush1.msra.mxu0 %v705
      %766 = vmatprep.subr.mxu0 0.0
      %767 = vmatpush1.msra.mxu0 %v707
      %768 = vmatprep.subr.mxu0 0.0
      %769 = vmatpush1.msra.mxu0 %v709
      %770 = vmatprep.subr.mxu0 0.0
      %771 = vmatpush1.msra.mxu0 0.0
      %772 = vmatprep.subr.mxu0 0.0
      %773 = vmatpush1.msra.mxu0 0.0
      %774 = vmatprep.subr.mxu0 0.0
      %775 = vmatpush1.msra.mxu0 0.0
      %776 = vmatprep.subr.mxu0 0.0
      %777 = vmatpush1.msra.mxu0 0.0
      %778 = vmatprep.subr.mxu0 0.0
      %779 = vmatpush1.msra.mxu0 0.0
      %780 = vmatprep.subr.mxu0 0.0
      %781 = vmatpush1.msra.mxu0 0.0
      %782 = vmatprep.subr.mxu0 0.0
      %783 = vmatpush1.msra.mxu0 0.0
      %784 = vmatprep.subr.mxu0 0.0
      %785 = vmatpush1.msra.mxu0 0.0
      %786 = vmatprep.subr.mxu0 0.0
      %787 = vmatpush1.msra.mxu0 0.0
      %788 = vmatprep.subr.mxu0 0.0
      %789 = vmatpush1.msra.mxu0 0.0
      %790 = vmatprep.subr.mxu0 0.0
      %791 = vmatpush1.msra.mxu0 0.0
      %792 = vmatprep.subr.mxu0 0.0
      %793 = vmatpush1.msra.mxu0 0.0
      %794 = vmatprep.subr.mxu0 0.0
      %795 = vmatpush1.msra.mxu0 0.0
      %796 = vmatprep.subr.mxu0 0.0
      %797 = vmatpush1.msra.mxu0 0.0
      %798 = vmatprep.subr.mxu0 0.0
      %799 = vmatpush1.msra.mxu0 0.0
      %800 = vmatprep.subr.mxu0 0.0
      %801 = vmatpush1.msra.mxu0 0.0
      %802 = vmatprep.subr.mxu0 0.0
      %803 = vmatpush1.msra.mxu0 0.0
      %804 = vmatprep.subr.mxu0 0.0
      %805 = vmatpush1.msra.mxu0 0.0
      %806 = vmatprep.subr.mxu0 0.0
      %807 = vmatpush1.msra.mxu0 0.0
      %808 = vmatprep.subr.mxu0 0.0
      %809 = vmatpush1.msra.mxu0 0.0
      %810 = vmatprep.subr.mxu0 0.0
      %811 = vmatpush1.msra.mxu0 0.0
      %812 = vmatprep.subr.mxu0 0.0
      %813 = vmatpush1.msra.mxu0 0.0
      %814 = vmatprep.subr.mxu0 0.0
      %815 = vmatpush1.msra.mxu0 0.0
      %816 = vmatprep.subr.mxu0 0.0
      %817 = vmatpush1.msra.mxu0 0.0
      %818 = vmatprep.mubr.f32.mxu0 0.0
      %819 = vmatmul.mubr.f32.gmra.mrb[0].mxu0 %v752
      %v820 = vpop.f32.mrb[0].mxu0
      %v821 = vadd.f32 0.0, %v820
      %v822 = vpop.f32.mrb[0].mxu0
      %823 = vdwg.mxu0
      %824 = vst [vmem:[%s222] sm:$0xff] %v821
      %p825 = scmp.lt.s32.totalorder %s15, 1
      %s826 = scalar_select %p825, %s15, 1
      %s827 = smul.addr %s826, 8
      %s828 = scalar_lea.vmem %s4, %s827
      // Predicated region
      $region37: #{forward_jit.1} parent=35 // pred_check
        %p829 = pneg %p127
      $region38: #{forward_jit.1} parent=35 // pred_check_branch
        %831 = sbr.rel (%p829) target = $region40
      $region39: #{forward_jit.1} parent=35 // pred_region
        _
      $region40: #{forward_jit.1} parent=35 // pred_fallthru
        _
    $region36: #{forward_jit.1} parent=5 // pred_fallthru
      _
    %p832 = scmp.le.s32.totalorder 2, %s10
    // Predicated region
    $region41: #{forward_jit.1} parent=5 // pred_check
      %p833 = pneg %p832
    $region42: #{forward_jit.1} parent=5 // pred_check_branch
      %835 = sbr.rel (%p833) target = $region44
    $region43: #{forward_jit.1} parent=5 // pred_region
      %s836 = ssub.s32 %s10, 2
      // Predicated region
      $region45: #{forward_jit.1} parent=43 // pred_check
        %p837 = pneg %p133
      $region46: #{forward_jit.1} parent=43 // pred_check_branch
        %839 = sbr.rel (%p837) target = $region48
      $region47: #{forward_jit.1} parent=43 // pred_region
        %p840 = scmp.lt.s32.totalorder %s16, 1
        %s841 = scalar_select %p840, %s16, 1
        %s842 = smul.addr %s841, 8
        %s843 = scalar_lea.vmem %s4, %s842
      $region48: #{forward_jit.1} parent=43 // pred_fallthru
        _
    $region44: #{forward_jit.1} parent=5 // pred_fallthru
      _
  $region6: #{forward_jit.1} parent=0 // loop_footer
    %s14 = sadd.s32 1, %s10
  $region7: #{forward_jit.1} parent=0 // loop_footer_branch
    %9 = sbr.rel target = $region3
  $region8: #{forward_jit.1} parent=0 // loop_exit
    _

</llo_original>
